<compile_context>
chip_gen: v6e
topology: v6e:2x2x1
jax: 0.10.0
libtpu: 0.0.40
codegen_flags: <defaults>
</compile_context>

<pallas_src>
import jax
import jax.numpy as jnp
from jax import lax
from jax.experimental import pallas as pl
from jax.experimental.pallas import tpu as pltpu


def rollout_kernel(x_ref, s0_ref, wih_ref, wsh_ref, why_ref, bhh_ref, bhy_ref,
                   outs_ref, states_ref, state_sc):
    g = pl.program_id(0)

    @pl.when(g == 0)
    def _():
        state_sc[...] = s0_ref[...]

    B, L = s0_ref.shape
    TC = x_ref.shape[0]

    # Resident operands: read once per grid step, outside the timestep loop.
    w_ih = wih_ref[...]                                   # (L, L): contracts inp
    w_sh = wsh_ref[...]                                   # (L, L): contracts state
    w_hy = why_ref[...]                                   # (L, L)
    b_hh = jnp.broadcast_to(bhh_ref[...], (B, L))         # broadcast hoisted
    b_hy = jnp.broadcast_to(bhy_ref[...], (B, L))

    def step(t, state):
        inp = x_ref[t]                                    # (B, L)
        # ns = [inp, state] @ W_hh.T + b_hh, with the concat split statically
        # and the transpose pre-applied in the wrapper.
        ns = (jnp.dot(inp, w_ih, preferred_element_type=jnp.float32)
              + jnp.dot(state, w_sh, preferred_element_type=jnp.float32)
              + b_hh)
        y = jnp.dot(ns, w_hy, preferred_element_type=jnp.float32) + b_hy
        states_ref[t] = ns.astype(states_ref.dtype)
        outs_ref[t] = y.astype(outs_ref.dtype)
        return ns

    # Unrolled in-kernel time loop over the TC timesteps of this chunk.
    state_sc[...] = lax.fori_loop(0, TC, step, state_sc[...], unroll=True)


def _pick_chunk(T, max_chunk):
    """Largest divisor of T that is <= max_chunk (timesteps per grid step)."""
    tc = min(T, max_chunk)
    while T % tc != 0:
        tc -= 1
    return tc


def my_rnn_rollout(inputs, state0, w_hh, b_hh, w_hy, b_hy, *, max_chunk=32):
    """Fused T-step rollout.

    inputs: (T, B, L); state0: (B, L); w_hh: (L, 2L), w_hy: (L, L) in PyTorch
    nn.Linear layout; b_hh, b_hy: (L,).  Returns (outs (T,B,L), states (T,B,L)).
    """
    T, B, L = inputs.shape
    assert w_hh.shape == (L, 2 * L) and w_hy.shape == (L, L)

    # One-time weight prep (amortized over the whole rollout): split the virtual
    # concat and pre-transpose so the kernel does plain x @ W on the MXU.
    w_hh = jnp.asarray(w_hh)
    w_ih = w_hh[:, :L].T                      # (L, L) — contracts the input half
    w_sh = w_hh[:, L:].T                      # (L, L) — contracts the state half
    w_hy_t = jnp.asarray(w_hy).T              # (L, L)
    bhh2 = jnp.asarray(b_hh).reshape(1, L)
    bhy2 = jnp.asarray(b_hy).reshape(1, L)

    tc = _pick_chunk(T, max_chunk)
    n_chunks = T // tc

    def resident(shape):
        return pl.BlockSpec(shape, lambda g: tuple(0 for _ in shape))

    flops = 6 * T * B * L * L                           # 3 matmuls of (B,L)x(L,L) per step
    bytes_accessed = 4 * (3 * L * L + 2 * L             # weights + biases
                          + (T + 1) * B * L             # inputs + state0
                          + 2 * T * B * L)              # two outputs

    outs, states = pl.pallas_call(
        rollout_kernel,
        out_shape=(
            jax.ShapeDtypeStruct((T, B, L), jnp.float32),   # outs
            jax.ShapeDtypeStruct((T, B, L), jnp.float32),   # states
        ),
        grid=(n_chunks,),
        in_specs=[
            pl.BlockSpec((tc, B, L), lambda g: (g, 0, 0)),  # inputs, TC-chunked
            resident((B, L)),                               # state0  (resident)
            resident((L, L)),                               # w_ih    (resident)
            resident((L, L)),                               # w_sh    (resident)
            resident((L, L)),                               # w_hy_T  (resident)
            resident((1, L)),                               # b_hh    (resident)
            resident((1, L)),                               # b_hy    (resident)
        ],
        out_specs=(
            # Chunked (tc,B,L) writeback slabs amortize the <128-lane store cost.
            pl.BlockSpec((tc, B, L), lambda g: (g, 0, 0)),
            pl.BlockSpec((tc, B, L), lambda g: (g, 0, 0)),
        ),
        scratch_shapes=[pltpu.VMEM((B, L), jnp.float32)],   # carried hidden state
        compiler_params=pltpu.CompilerParams(
            dimension_semantics=("arbitrary",)),            # recurrence: sequential
        cost_estimate=pl.CostEstimate(
            flops=flops, transcendentals=0, bytes_accessed=bytes_accessed),
    )(inputs, state0, w_ih, w_sh, w_hy_t, bhh2, bhy2)
    return outs, states


def my_one_step(inp, state, w_hh, b_hh, w_hy, b_hy):
    """Single RNN step (MyOneStep.forward math), routed through the fused rollout."""
    outs, states = my_rnn_rollout(inp[None], state, w_hh, b_hh, w_hy, b_hy)
    return outs[0], states[0]


def _reference_step(inp, state, w_hh, b_hh, w_hy, b_hy):
    x = jnp.concatenate([inp, state], axis=1)
    ns = x @ w_hh.T + b_hh
    out = ns @ w_hy.T + b_hy
    return out, ns


if __name__ == "__main__":
    # Small shapes consistent with the module: batch=8, hidden(layer_size)=32, seq=8.
    B, L, T = 8, 32, 8
    key = jax.random.PRNGKey(0)
    k_inp, k_state, k_whh, k_bhh, k_why, k_bhy, k_seq = jax.random.split(key, 7)

    inp = jax.random.normal(k_inp, (B, L), dtype=jnp.float32)
    state = jax.random.normal(k_state, (B, L), dtype=jnp.float32)
    inputs_seq = jax.random.normal(k_seq, (T, B, L), dtype=jnp.float32)

    # Deterministic parameter init mimicking nn.Linear: U(-1/sqrt(fan_in), 1/sqrt(fan_in)).
    bound_hh = 1.0 / jnp.sqrt(2.0 * L)
    bound_hy = 1.0 / jnp.sqrt(1.0 * L)
    w_hh = jax.random.uniform(k_whh, (L, 2 * L), jnp.float32, -bound_hh, bound_hh)
    b_hh = jax.random.uniform(k_bhh, (L,), jnp.float32, -bound_hh, bound_hh)
    w_hy = jax.random.uniform(k_why, (L, L), jnp.float32, -bound_hy, bound_hy)
    b_hy = jax.random.uniform(k_bhy, (L,), jnp.float32, -bound_hy, bound_hy)

    # --- single step (matches MyOneStep.forward math) ---
    out, new_state = jax.block_until_ready(
        my_one_step(inp, state, w_hh, b_hh, w_hy, b_hy))
    ref_out, ref_ns = _reference_step(inp, state, w_hh, b_hh, w_hy, b_hy)
    assert out.shape == (B, L) and new_state.shape == (B, L)
    assert jnp.allclose(out, ref_out, atol=1e-5, rtol=1e-5)
    assert jnp.allclose(new_state, ref_ns, atol=1e-5, rtol=1e-5)

    # --- fused T-step rollout (one launch, weights + state VMEM-resident) ---
    outs, states = jax.block_until_ready(
        my_rnn_rollout(inputs_seq, state, w_hh, b_hh, w_hy, b_hy))
    s = state
    for t in range(T):
        r_out, s = _reference_step(inputs_seq[t], s, w_hh, b_hh, w_hy, b_hy)
        assert jnp.allclose(outs[t], r_out, atol=1e-4, rtol=1e-4)
        assert jnp.allclose(states[t], s, atol=1e-4, rtol=1e-4)

    print("KERNEL_OK")
</pallas_src>

<mosaic_0001>
module attributes {stable_mosaic.version = 11 : i64} {
  func.func @rollout_kernel(%arg0: i32, %arg1: memref<1x8x32xf32, #tpu.memory_space<vmem>>, %arg2: memref<8x32xf32, #tpu.memory_space<vmem>>, %arg3: memref<32x32xf32, #tpu.memory_space<vmem>>, %arg4: memref<32x32xf32, #tpu.memory_space<vmem>>, %arg5: memref<32x32xf32, #tpu.memory_space<vmem>>, %arg6: memref<1x32xf32, #tpu.memory_space<vmem>>, %arg7: memref<1x32xf32, #tpu.memory_space<vmem>>, %arg8: memref<1x8x32xf32, #tpu.memory_space<vmem>>, %arg9: memref<1x8x32xf32, #tpu.memory_space<vmem>>, %arg10: memref<8x32xf32, #tpu.memory_space<vmem>>) attributes {dimension_semantics = [#tpu.dimension_semantics<arbitrary>], iteration_bounds = array<i64: 1>, scalar_prefetch = 0 : i64, scratch_operands = 1 : i64, tpu.core_type = #tpu.core_type<tc>, window_params = [{transform_indices = @transform_0, window_bounds = array<i64: 1, 8, 32>}, {pipeline_mode = #tpu.pipeline_mode<synchronous>, transform_indices = @transform_1, window_bounds = array<i64: 8, 32>}, {pipeline_mode = #tpu.pipeline_mode<synchronous>, transform_indices = @transform_2, window_bounds = array<i64: 32, 32>}, {pipeline_mode = #tpu.pipeline_mode<synchronous>, transform_indices = @transform_3, window_bounds = array<i64: 32, 32>}, {pipeline_mode = #tpu.pipeline_mode<synchronous>, transform_indices = @transform_4, window_bounds = array<i64: 32, 32>}, {pipeline_mode = #tpu.pipeline_mode<synchronous>, transform_indices = @transform_5, window_bounds = array<i64: 1, 32>}, {pipeline_mode = #tpu.pipeline_mode<synchronous>, transform_indices = @transform_6, window_bounds = array<i64: 1, 32>}, {transform_indices = @transform_7, window_bounds = array<i64: 1, 8, 32>}, {transform_indices = @transform_8, window_bounds = array<i64: 1, 8, 32>}]} {
    %c0_i32 = arith.constant 0 : i32
    %0 = arith.cmpi eq, %arg0, %c0_i32 : i32
    %1 = arith.extui %0 : i1 to i32
    %c0_i32_0 = arith.constant 0 : i32
    %2 = arith.cmpi ne, %1, %c0_i32_0 : i32
    scf.if %2 {
      %c0_23 = arith.constant 0 : index
      %c0_24 = arith.constant 0 : index
      %31 = vector.load %arg2[%c0_23, %c0_24] : memref<8x32xf32, #tpu.memory_space<vmem>>, vector<8x32xf32>
      %c0_25 = arith.constant 0 : index
      %c0_26 = arith.constant 0 : index
      %32 = vector.load %arg10[%c0_25, %c0_26] : memref<8x32xf32, #tpu.memory_space<vmem>>, vector<8x32xf32>
      tpu.vector_store %arg10[%c0_25, %c0_26], %31 {strides = array<i32>} : memref<8x32xf32, #tpu.memory_space<vmem>>, vector<8x32xf32>,
    } else {
    }
    %c0 = arith.constant 0 : index
    %c0_1 = arith.constant 0 : index
    %3 = vector.load %arg3[%c0, %c0_1] : memref<32x32xf32, #tpu.memory_space<vmem>>, vector<32x32xf32>
    %c0_2 = arith.constant 0 : index
    %c0_3 = arith.constant 0 : index
    %4 = vector.load %arg4[%c0_2, %c0_3] : memref<32x32xf32, #tpu.memory_space<vmem>>, vector<32x32xf32>
    %c0_4 = arith.constant 0 : index
    %c0_5 = arith.constant 0 : index
    %5 = vector.load %arg5[%c0_4, %c0_5] : memref<32x32xf32, #tpu.memory_space<vmem>>, vector<32x32xf32>
    %c0_6 = arith.constant 0 : index
    %c0_7 = arith.constant 0 : index
    %6 = vector.load %arg6[%c0_6, %c0_7] : memref<1x32xf32, #tpu.memory_space<vmem>>, vector<1x32xf32>
    %7 = vector.shape_cast %6 : vector<1x32xf32> to vector<1x32xf32>
    %8 = vector.broadcast %7 : vector<1x32xf32> to vector<8x32xf32>
    %c0_8 = arith.constant 0 : index
    %c0_9 = arith.constant 0 : index
    %9 = vector.load %arg7[%c0_8, %c0_9] : memref<1x32xf32, #tpu.memory_space<vmem>>, vector<1x32xf32>
    %10 = vector.shape_cast %9 : vector<1x32xf32> to vector<1x32xf32>
    %11 = vector.broadcast %10 : vector<1x32xf32> to vector<8x32xf32>
    %c0_10 = arith.constant 0 : index
    %c0_11 = arith.constant 0 : index
    %12 = vector.load %arg10[%c0_10, %c0_11] : memref<8x32xf32, #tpu.memory_space<vmem>>, vector<8x32xf32>
    %c0_i32_12 = arith.constant 0 : i32
    %13 = arith.index_cast %c0_i32_12 : i32 to index
    %c0_13 = arith.constant 0 : index
    %c0_14 = arith.constant 0 : index
    %14 = vector.load %arg1[%13, %c0_13, %c0_14] : memref<1x8x32xf32, #tpu.memory_space<vmem>>, vector<1x8x32xf32>
    %15 = vector.shape_cast %14 : vector<1x8x32xf32> to vector<8x32xf32>
    %cst = arith.constant dense<0.000000e+00> : vector<8x32xf32>
    %16 = tpu.matmul %15, %3, %cst {dimension_numbers = #tpu.dot_dimension_numbers<[1], [0], [0], [1], [0, 0, 1, 1], [], []>} : vector<8x32xf32>, vector<32x32xf32>, vector<8x32xf32> -> vector<8x32xf32>
    %cst_15 = arith.constant dense<0.000000e+00> : vector<8x32xf32>
    %17 = tpu.matmul %12, %4, %cst_15 {dimension_numbers = #tpu.dot_dimension_numbers<[1], [0], [0], [1], [0, 0, 1, 1], [], []>} : vector<8x32xf32>, vector<32x32xf32>, vector<8x32xf32> -> vector<8x32xf32>
    %18 = arith.addf %16, %17 : vector<8x32xf32>
    %19 = arith.addf %18, %8 : vector<8x32xf32>
    %cst_16 = arith.constant dense<0.000000e+00> : vector<8x32xf32>
    %20 = tpu.matmul %19, %5, %cst_16 {dimension_numbers = #tpu.dot_dimension_numbers<[1], [0], [0], [1], [0, 0, 1, 1], [], []>} : vector<8x32xf32>, vector<32x32xf32>, vector<8x32xf32> -> vector<8x32xf32>
    %21 = arith.addf %20, %11 : vector<8x32xf32>
    %22 = arith.index_cast %c0_i32_12 : i32 to index
    %c0_17 = arith.constant 0 : index
    %c0_18 = arith.constant 0 : index
    %23 = vector.load %arg9[%22, %c0_17, %c0_18] : memref<1x8x32xf32, #tpu.memory_space<vmem>>, vector<1x8x32xf32>
    %24 = vector.shape_cast %23 : vector<1x8x32xf32> to vector<8x32xf32>
    %25 = vector.shape_cast %19 : vector<8x32xf32> to vector<1x8x32xf32>
    tpu.vector_store %arg9[%22, %c0_17, %c0_18], %25 {strides = array<i32>} : memref<1x8x32xf32, #tpu.memory_space<vmem>>, vector<1x8x32xf32>,
    %26 = arith.index_cast %c0_i32_12 : i32 to index
    %c0_19 = arith.constant 0 : index
    %c0_20 = arith.constant 0 : index
    %27 = vector.load %arg8[%26, %c0_19, %c0_20] : memref<1x8x32xf32, #tpu.memory_space<vmem>>, vector<1x8x32xf32>
    %28 = vector.shape_cast %27 : vector<1x8x32xf32> to vector<8x32xf32>
    %29 = vector.shape_cast %21 : vector<8x32xf32> to vector<1x8x32xf32>
    tpu.vector_store %arg8[%26, %c0_19, %c0_20], %29 {strides = array<i32>} : memref<1x8x32xf32, #tpu.memory_space<vmem>>, vector<1x8x32xf32>,
    %c1_i32 = arith.constant 1 : i32
    %c0_21 = arith.constant 0 : index
    %c0_22 = arith.constant 0 : index
    %30 = vector.load %arg10[%c0_21, %c0_22] : memref<8x32xf32, #tpu.memory_space<vmem>>, vector<8x32xf32>
    tpu.vector_store %arg10[%c0_21, %c0_22], %19 {strides = array<i32>} : memref<8x32xf32, #tpu.memory_space<vmem>>, vector<8x32xf32>,
    return
  }
  func.func @transform_0(%arg0: i32) -> (i32, i32, i32) {
    %c0_i32 = arith.constant 0 : i32
    %c0_i32_0 = arith.constant 0 : i32
    %c0_i32_1 = arith.constant 0 : i32
    return %arg0, %c0_i32, %c0_i32_0 : i32, i32, i32
  }
  func.func @transform_1(%arg0: i32) -> (i32, i32) {
    %c0_i32 = arith.constant 0 : i32
    %c0_i32_0 = arith.constant 0 : i32
    %c0_i32_1 = arith.constant 0 : i32
    return %c0_i32, %c0_i32_0 : i32, i32
  }
  func.func @transform_2(%arg0: i32) -> (i32, i32) {
    %c0_i32 = arith.constant 0 : i32
    %c0_i32_0 = arith.constant 0 : i32
    %c0_i32_1 = arith.constant 0 : i32
    return %c0_i32, %c0_i32_0 : i32, i32
  }
  func.func @transform_3(%arg0: i32) -> (i32, i32) {
    %c0_i32 = arith.constant 0 : i32
    %c0_i32_0 = arith.constant 0 : i32
    %c0_i32_1 = arith.constant 0 : i32
    return %c0_i32, %c0_i32_0 : i32, i32
  }
  func.func @transform_4(%arg0: i32) -> (i32, i32) {
    %c0_i32 = arith.constant 0 : i32
    %c0_i32_0 = arith.constant 0 : i32
    %c0_i32_1 = arith.constant 0 : i32
    return %c0_i32, %c0_i32_0 : i32, i32
  }
  func.func @transform_5(%arg0: i32) -> (i32, i32) {
    %c0_i32 = arith.constant 0 : i32
    %c0_i32_0 = arith.constant 0 : i32
    %c0_i32_1 = arith.constant 0 : i32
    return %c0_i32, %c0_i32_0 : i32, i32
  }
  func.func @transform_6(%arg0: i32) -> (i32, i32) {
    %c0_i32 = arith.constant 0 : i32
    %c0_i32_0 = arith.constant 0 : i32
    %c0_i32_1 = arith.constant 0 : i32
    return %c0_i32, %c0_i32_0 : i32, i32
  }
  func.func @transform_7(%arg0: i32) -> (i32, i32, i32) {
    %c0_i32 = arith.constant 0 : i32
    %c0_i32_0 = arith.constant 0 : i32
    %c0_i32_1 = arith.constant 0 : i32
    return %arg0, %c0_i32, %c0_i32_0 : i32, i32, i32
  }
  func.func @transform_8(%arg0: i32) -> (i32, i32, i32) {
    %c0_i32 = arith.constant 0 : i32
    %c0_i32_0 = arith.constant 0 : i32
    %c0_i32_1 = arith.constant 0 : i32
    return %arg0, %c0_i32, %c0_i32_0 : i32, i32, i32
  }
}

</mosaic_0001>

<llo_original>
// kernel: tpu_custom_call.1
$region0: #{tpu_custom_call.1}
  #allocation0 [shape = 'u32[]', space=smem, size = 0x4, offset = 0x4, fixed_abs, tag = 'smem constant byte address 0x4 - core index']
  #allocation1 [shape = 'u32[144,128]{1,0:T(1,128)}', space=vmem, size = 0x12000, scoped, tag = 'internal scratch']
  #allocation2 [shape = 'f32[8,32]{1,0:T(8,128)}', space=vmem, size = 0x1000, scoped, tag = 'scratch operand']
  %s0 = inlined_call_operand.hbm [shape: f32[1,8,32], index: 0, kind: input, shape index: {}]
  %s1 = inlined_call_operand.hbm [shape: f32[8,32], index: 1, kind: input, shape index: {}]
  %s2 = inlined_call_operand.hbm [shape: f32[32,32], index: 2, kind: input, shape index: {}]
  %s3 = inlined_call_operand.hbm [shape: f32[32,32], index: 3, kind: input, shape index: {}]
  %s4 = inlined_call_operand.hbm [shape: f32[32,32], index: 4, kind: input, shape index: {}]
  %s5 = inlined_call_operand.vmem [shape: f32[1,32], index: 5, kind: input, shape index: {}]
  %s6 = inlined_call_operand.vmem [shape: f32[1,32], index: 6, kind: input, shape index: {}]
  %s7 = inlined_call_operand.hbm [shape: f32[1,8,32], index: 7, kind: output, shape index: {0}]
  %s8 = inlined_call_operand.hbm [shape: f32[1,8,32], index: 8, kind: output, shape index: {1}]
  %9 = xla_tuple %s7, %s8
  %s10 = sld [smem:[#allocation0]]
  $region70: #{tpu_custom_call.1} parent=0
    _
  %s12 = ssub.s32 1, %s10
  %s13 = scalar_select 0, %s12, %s10
  $region1: #{tpu_custom_call.1} parent=0
    #allocation3 [shape = 'u8[4096]{0}', space=vmem, size = 0x1000, scoped, tag = 'input window, operand 0, single buffered']
    #allocation4 [shape = 's32[1]{0}', space=sflag, size = 0x4, scoped, tag = 'scoped memory for tpu_custom_call.1']
    #allocation5 [shape = 's32[1]{0}', space=sflag, size = 0x4, scoped, tag = 'scoped memory for tpu_custom_call.1']
    #allocation6 [shape = 'u8[4096]{0}', space=vmem, size = 0x1000, scoped, tag = 'input window, operand 1, single buffered']
    #allocation7 [shape = 's32[1]{0}', space=sflag, size = 0x4, scoped, tag = 'scoped memory for tpu_custom_call.1']
    #allocation8 [shape = 'u8[16384]{0}', space=vmem, size = 0x4000, scoped, tag = 'input window, operand 2, single buffered']
    #allocation9 [shape = 'u8[16384]{0}', space=vmem, size = 0x4000, scoped, tag = 'input window, operand 3, single buffered']
    #allocation10 [shape = 's32[1]{0}', space=sflag, size = 0x4, scoped, tag = 'scoped memory for tpu_custom_call.1']
    #allocation11 [shape = 'u8[16384]{0}', space=vmem, size = 0x4000, scoped, tag = 'input window, operand 4, single buffered']
    #allocation12 [shape = 'u8[4096]{0}', space=vmem, size = 0x1000, scoped, tag = 'output window, operand 0, single buffered']
    #allocation13 [shape = 'u8[4096]{0}', space=vmem, size = 0x1000, scoped, tag = 'output window, operand 1, single buffered']
    #allocation14 [shape = 's32[1]{0}', space=sflag, size = 0x4, scoped, tag = 'scoped memory for tpu_custom_call.1']
    %14 = vsyncpa [#allocation4], 0
    %15 = vsyncpa [#allocation7], 0
    %16 = vsyncpa [#allocation10], 0
    %17 = vsyncpa [#allocation5], 0
    %18 = vsyncpa [#allocation14], 0
    // Predicated region
    $region2: #{tpu_custom_call.1} parent=1 // pred_check
      _
    $region3: #{tpu_custom_call.1} parent=1 // pred_check_branch
      %20 = sbr.rel (0) target = $region5
    $region4: #{tpu_custom_call.1} parent=1 // pred_region
      %s22 = ssub.s32 128, 128
      %23 = vsyncadd [#allocation4], %s22
      %s25 = sshll.u32 [#allocation3], 4
      %s26 = int_to_ptr.vmem [resolvable:$true] %s25
      %28 = dma.hbm_to_vmem [thread:$0]  %s0, 128, %s26, [#allocation4]
    $region5: #{tpu_custom_call.1} parent=1 // pred_fallthru
      _
    // Predicated region
    $region6: #{tpu_custom_call.1} parent=1 // pred_check
      _
    $region7: #{tpu_custom_call.1} parent=1 // pred_check_branch
      %30 = sbr.rel (0) target = $region9
    $region8: #{tpu_custom_call.1} parent=1 // pred_region
      %s32 = ssub.s32 128, 128
      %33 = vsyncadd [#allocation7], %s32
      %s35 = sshll.u32 [#allocation6], 4
      %s36 = int_to_ptr.vmem [resolvable:$true] %s35
      %38 = dma.hbm_to_vmem [thread:$0]  %s1, 128, %s36, [#allocation7]
    $region9: #{tpu_custom_call.1} parent=1 // pred_fallthru
      _
    // Predicated region
    $region10: #{tpu_custom_call.1} parent=1 // pred_check
      _
    $region11: #{tpu_custom_call.1} parent=1 // pred_check_branch
      %40 = sbr.rel (0) target = $region13
    $region12: #{tpu_custom_call.1} parent=1 // pred_region
      %s42 = ssub.s32 512, 512
      %43 = vsyncadd [#allocation7], %s42
      %s44 = sshll.u32 [#allocation8], 4
      %s45 = int_to_ptr.vmem [resolvable:$true] %s44
      %50 = dma.hbm_to_vmem [thread:$0]  %s2, 512, %s45, [#allocation7], 128, 128, 8
    $region13: #{tpu_custom_call.1} parent=1 // pred_fallthru
      _
    // Predicated region
    $region14: #{tpu_custom_call.1} parent=1 // pred_check
      _
    $region15: #{tpu_custom_call.1} parent=1 // pred_check_branch
      %52 = sbr.rel (0) target = $region17
    $region16: #{tpu_custom_call.1} parent=1 // pred_region
      %s54 = ssub.s32 512, 512
      %55 = vsyncadd [#allocation10], %s54
      %s56 = sshll.u32 [#allocation9], 4
      %s57 = int_to_ptr.vmem [resolvable:$true] %s56
      %62 = dma.hbm_to_vmem [thread:$0]  %s3, 512, %s57, [#allocation10], 128, 128, 8
    $region17: #{tpu_custom_call.1} parent=1 // pred_fallthru
      _
    // Predicated region
    $region18: #{tpu_custom_call.1} parent=1 // pred_check
      _
    $region19: #{tpu_custom_call.1} parent=1 // pred_check_branch
      %64 = sbr.rel (0) target = $region21
    $region20: #{tpu_custom_call.1} parent=1 // pred_region
      %s66 = ssub.s32 512, 512
      %67 = vsyncadd [#allocation10], %s66
      %s68 = sshll.u32 [#allocation11], 4
      %s69 = int_to_ptr.vmem [resolvable:$true] %s68
      %74 = dma.hbm_to_vmem [thread:$0]  %s4, 512, %s69, [#allocation10], 128, 128, 8
    $region21: #{tpu_custom_call.1} parent=1 // pred_fallthru
      _
    // Predicated region
    $region22: #{tpu_custom_call.1} parent=1 // pred_check
      _
    $region23: #{tpu_custom_call.1} parent=1 // pred_check_branch
      %76 = sbr.rel (0) target = $region25
    $region24: #{tpu_custom_call.1} parent=1 // pred_region
      _
    $region25: #{tpu_custom_call.1} parent=1 // pred_fallthru
      _
    // Predicated region
    $region26: #{tpu_custom_call.1} parent=1 // pred_check
      _
    $region27: #{tpu_custom_call.1} parent=1 // pred_check_branch
      %78 = sbr.rel (0) target = $region29
    $region28: #{tpu_custom_call.1} parent=1 // pred_region
      _
    $region29: #{tpu_custom_call.1} parent=1 // pred_fallthru
      _
    // Predicated region
    $region30: #{tpu_custom_call.1} parent=1 // pred_check
      _
    $region31: #{tpu_custom_call.1} parent=1 // pred_check_branch
      %80 = sbr.rel (0) target = $region33
    $region32: #{tpu_custom_call.1} parent=1 // pred_region
      %81 = dma.done [#allocation4], 128
    $region33: #{tpu_custom_call.1} parent=1 // pred_fallthru
      _
    // Predicated region
    $region34: #{tpu_custom_call.1} parent=1 // pred_check
      _
    $region35: #{tpu_custom_call.1} parent=1 // pred_check_branch
      %83 = sbr.rel (0) target = $region37
    $region36: #{tpu_custom_call.1} parent=1 // pred_region
      %84 = dma.done [#allocation7], 128
    $region37: #{tpu_custom_call.1} parent=1 // pred_fallthru
      _
    // Predicated region
    $region38: #{tpu_custom_call.1} parent=1 // pred_check
      _
    $region39: #{tpu_custom_call.1} parent=1 // pred_check_branch
      %86 = sbr.rel (0) target = $region41
    $region40: #{tpu_custom_call.1} parent=1 // pred_region
      %87 = dma.done [#allocation7], 512
    $region41: #{tpu_custom_call.1} parent=1 // pred_fallthru
      _
    // Predicated region
    $region42: #{tpu_custom_call.1} parent=1 // pred_check
      _
    $region43: #{tpu_custom_call.1} parent=1 // pred_check_branch
      %89 = sbr.rel (0) target = $region45
    $region44: #{tpu_custom_call.1} parent=1 // pred_region
      %90 = dma.done [#allocation10], 512
    $region45: #{tpu_custom_call.1} parent=1 // pred_fallthru
      _
    // Predicated region
    $region46: #{tpu_custom_call.1} parent=1 // pred_check
      _
    $region47: #{tpu_custom_call.1} parent=1 // pred_check_branch
      %92 = sbr.rel (0) target = $region49
    $region48: #{tpu_custom_call.1} parent=1 // pred_region
      %93 = dma.done [#allocation10], 512
    $region49: #{tpu_custom_call.1} parent=1 // pred_fallthru
      _
    %p94 = scmp.eq.s32.totalorder 0, 0
    // Predicated region
    $region50: #{tpu_custom_call.1} parent=1 // pred_check
      %p95 = pneg %p94
    $region51: #{tpu_custom_call.1} parent=1 // pred_check_branch
      %97 = sbr.rel (%p95) target = $region53
    $region52: #{tpu_custom_call.1} parent=1 // pred_region
      %v98 = vld [vmem:[#allocation6] sm:$0xff]
      %vm99 = vcmask 261120
      %100 = vst.msk [vmem:[#allocation2] sm:$0xff] %vm99, %v98
    $region53: #{tpu_custom_call.1} parent=1 // pred_fallthru
      _
    %v101 = vld [vmem:[#allocation8] sm:$0xff]
    %v102 = vld [vmem:[#allocation8 + $0x8] sm:$0xff]
    %v103 = vld [vmem:[#allocation8 + $0x10] sm:$0xff]
    %v104 = vld [vmem:[#allocation8 + $0x18] sm:$0xff]
    %v105 = vld [vmem:[#allocation9] sm:$0xff]
    %v106 = vld [vmem:[#allocation9 + $0x8] sm:$0xff]
    %v107 = vld [vmem:[#allocation9 + $0x10] sm:$0xff]
    %v108 = vld [vmem:[#allocation9 + $0x18] sm:$0xff]
    %v109 = vld [vmem:[#allocation11] sm:$0xff]
    %v110 = vld [vmem:[#allocation11 + $0x8] sm:$0xff]
    %v111 = vld [vmem:[#allocation11 + $0x10] sm:$0xff]
    %v112 = vld [vmem:[#allocation11 + $0x18] sm:$0xff]
    %v113 = vld [vmem:[%s5] sm:$0x1]
    %v115 = vlaneseq
    %v116 = vshrl.u32 %v115, 7
    %v117 = vsub.s32 0, %v116
    %v118 = vrot.slane %v113, %v117
    %v120 = vld [vmem:[%s6] sm:$0x1]
    %v122 = vlaneseq
    %v123 = vshrl.u32 %v122, 7
    %v124 = vsub.s32 0, %v123
    %v125 = vrot.slane %v120, %v124
    %v127 = vld [vmem:[#allocation2] sm:$0xff]
    %v128 = vld [vmem:[#allocation3] sm:$0xff]
    %vm129 = vcmask 261120
    %v131 = vsel %vm129, %v127, 0
    %133 = vmatprep.subr.mxu0 0.0
    %134 = vmatpush1.msra.mxu0 0.0
    %135 = vmatprep.subr.mxu0 0.0
    %136 = vmatpush1.msra.mxu0 0.0
    %137 = vmatprep.subr.mxu0 0.0
    %138 = vmatpush1.msra.mxu0 0.0
    %139 = vmatprep.subr.mxu0 0.0
    %140 = vmatpush1.msra.mxu0 0.0
    %141 = vmatprep.subr.mxu0 0.0
    %142 = vmatpush1.msra.mxu0 0.0
    %143 = vmatprep.subr.mxu0 0.0
    %144 = vmatpush1.msra.mxu0 0.0
    %145 = vmatprep.subr.mxu0 0.0
    %146 = vmatpush1.msra.mxu0 0.0
    %147 = vmatprep.subr.mxu0 0.0
    %148 = vmatpush1.msra.mxu0 0.0
    %149 = vmatprep.subr.mxu0 0.0
    %150 = vmatpush1.msra.mxu0 0.0
    %151 = vmatprep.subr.mxu0 0.0
    %152 = vmatpush1.msra.mxu0 0.0
    %153 = vmatprep.subr.mxu0 0.0
    %154 = vmatpush1.msra.mxu0 0.0
    %155 = vmatprep.subr.mxu0 0.0
    %156 = vmatpush1.msra.mxu0 0.0
    %157 = vmatprep.subr.mxu0 0.0
    %158 = vmatpush1.msra.mxu0 %v108
    %159 = vmatprep.subr.mxu0 0.0
    %160 = vmatpush1.msra.mxu0 %v107
    %161 = vmatprep.subr.mxu0 0.0
    %162 = vmatpush1.msra.mxu0 %v106
    %163 = vmatprep.subr.mxu0 0.0
    %164 = vmatpush1.msra.mxu0 %v105
    %165 = vmatprep.subr.mxu0 0.0
    %166 = vmatpush2.msra.mxu0 0.0
    %167 = vmatprep.subr.mxu0 0.0
    %168 = vmatpush2.msra.mxu0 0.0
    %169 = vmatprep.subr.mxu0 0.0
    %170 = vmatpush2.msra.mxu0 0.0
    %171 = vmatprep.subr.mxu0 0.0
    %172 = vmatpush2.msra.mxu0 0.0
    %173 = vmatprep.subr.mxu0 0.0
    %174 = vmatpush2.msra.mxu0 0.0
    %175 = vmatprep.subr.mxu0 0.0
    %176 = vmatpush2.msra.mxu0 0.0
    %177 = vmatprep.subr.mxu0 0.0
    %178 = vmatpush2.msra.mxu0 0.0
    %179 = vmatprep.subr.mxu0 0.0
    %180 = vmatpush2.msra.mxu0 0.0
    %181 = vmatprep.subr.mxu0 0.0
    %182 = vmatpush2.msra.mxu0 0.0
    %183 = vmatprep.subr.mxu0 0.0
    %184 = vmatpush2.msra.mxu0 0.0
    %185 = vmatprep.subr.mxu0 0.0
    %186 = vmatpush2.msra.mxu0 0.0
    %187 = vmatprep.subr.mxu0 0.0
    %188 = vmatpush2.msra.mxu0 0.0
    %189 = vmatprep.subr.mxu0 0.0
    %190 = vmatpush2.msra.mxu0 0.0
    %191 = vmatprep.subr.mxu0 0.0
    %192 = vmatpush2.msra.mxu0 0.0
    %193 = vmatprep.subr.mxu0 0.0
    %194 = vmatpush2.msra.mxu0 0.0
    %195 = vmatprep.subr.mxu0 0.0
    %196 = vmatpush2.msra.mxu0 0.0
    %197 = vmatprep.mubr.f32.mxu0 0.0
    %198 = vmatmul.mubr.f32.gmra.mxu0 %v131
    %v199 = vpop.f32.mrf.mxu0
    %v200 = vadd.f32 0.0, %v199
    %v201 = vpop.f32.mrf.mxu0
    %202 = vdwg.mxu0
    %v204 = vsel %vm129, %v128, 0
    %206 = vmatprep.subr.mxu0 0.0
    %207 = vmatpush1.msra.mxu0 0.0
    %208 = vmatprep.subr.mxu0 0.0
    %209 = vmatpush1.msra.mxu0 0.0
    %210 = vmatprep.subr.mxu0 0.0
    %211 = vmatpush1.msra.mxu0 0.0
    %212 = vmatprep.subr.mxu0 0.0
    %213 = vmatpush1.msra.mxu0 0.0
    %214 = vmatprep.subr.mxu0 0.0
    %215 = vmatpush1.msra.mxu0 0.0
    %216 = vmatprep.subr.mxu0 0.0
    %217 = vmatpush1.msra.mxu0 0.0
    %218 = vmatprep.subr.mxu0 0.0
    %219 = vmatpush1.msra.mxu0 0.0
    %220 = vmatprep.subr.mxu0 0.0
    %221 = vmatpush1.msra.mxu0 0.0
    %222 = vmatprep.subr.mxu0 0.0
    %223 = vmatpush1.msra.mxu0 0.0
    %224 = vmatprep.subr.mxu0 0.0
    %225 = vmatpush1.msra.mxu0 0.0
    %226 = vmatprep.subr.mxu0 0.0
    %227 = vmatpush1.msra.mxu0 0.0
    %228 = vmatprep.subr.mxu0 0.0
    %229 = vmatpush1.msra.mxu0 0.0
    %230 = vmatprep.subr.mxu0 0.0
    %231 = vmatpush1.msra.mxu0 %v104
    %232 = vmatprep.subr.mxu0 0.0
    %233 = vmatpush1.msra.mxu0 %v103
    %234 = vmatprep.subr.mxu0 0.0
    %235 = vmatpush1.msra.mxu0 %v102
    %236 = vmatprep.subr.mxu0 0.0
    %237 = vmatpush1.msra.mxu0 %v101
    %238 = vmatprep.subr.mxu0 0.0
    %239 = vmatpush2.msra.mxu0 0.0
    %240 = vmatprep.subr.mxu0 0.0
    %241 = vmatpush2.msra.mxu0 0.0
    %242 = vmatprep.subr.mxu0 0.0
    %243 = vmatpush2.msra.mxu0 0.0
    %244 = vmatprep.subr.mxu0 0.0
    %245 = vmatpush2.msra.mxu0 0.0
    %246 = vmatprep.subr.mxu0 0.0
    %247 = vmatpush2.msra.mxu0 0.0
    %248 = vmatprep.subr.mxu0 0.0
    %249 = vmatpush2.msra.mxu0 0.0
    %250 = vmatprep.subr.mxu0 0.0
    %251 = vmatpush2.msra.mxu0 0.0
    %252 = vmatprep.subr.mxu0 0.0
    %253 = vmatpush2.msra.mxu0 0.0
    %254 = vmatprep.subr.mxu0 0.0
    %255 = vmatpush2.msra.mxu0 0.0
    %256 = vmatprep.subr.mxu0 0.0
    %257 = vmatpush2.msra.mxu0 0.0
    %258 = vmatprep.subr.mxu0 0.0
    %259 = vmatpush2.msra.mxu0 0.0
    %260 = vmatprep.subr.mxu0 0.0
    %261 = vmatpush2.msra.mxu0 0.0
    %262 = vmatprep.subr.mxu0 0.0
    %263 = vmatpush2.msra.mxu0 0.0
    %264 = vmatprep.subr.mxu0 0.0
    %265 = vmatpush2.msra.mxu0 0.0
    %266 = vmatprep.subr.mxu0 0.0
    %267 = vmatpush2.msra.mxu0 0.0
    %268 = vmatprep.subr.mxu0 0.0
    %269 = vmatpush2.msra.mxu0 0.0
    %270 = vmatprep.mubr.f32.mxu0 0.0
    %271 = vmatmul.mubr.f32.gmra.mxu0 %v204
    %v272 = vpop.f32.mrf.mxu0
    %v273 = vadd.f32 %v200, %v272
    %v274 = vpop.f32.mrf.mxu0
    %275 = vdwg.mxu0
    %v276 = vadd.f32 %v273, %v118
    %v278 = vsel %vm129, %v276, 0
    %280 = vmatprep.subr.mxu0 0.0
    %281 = vmatpush1.msra.mxu0 0.0
    %282 = vmatprep.subr.mxu0 0.0
    %283 = vmatpush1.msra.mxu0 0.0
    %284 = vmatprep.subr.mxu0 0.0
    %285 = vmatpush1.msra.mxu0 0.0
    %286 = vmatprep.subr.mxu0 0.0
    %287 = vmatpush1.msra.mxu0 0.0
    %288 = vmatprep.subr.mxu0 0.0
    %289 = vmatpush1.msra.mxu0 0.0
    %290 = vmatprep.subr.mxu0 0.0
    %291 = vmatpush1.msra.mxu0 0.0
    %292 = vmatprep.subr.mxu0 0.0
    %293 = vmatpush1.msra.mxu0 0.0
    %294 = vmatprep.subr.mxu0 0.0
    %295 = vmatpush1.msra.mxu0 0.0
    %296 = vmatprep.subr.mxu0 0.0
    %297 = vmatpush1.msra.mxu0 0.0
    %298 = vmatprep.subr.mxu0 0.0
    %299 = vmatpush1.msra.mxu0 0.0
    %300 = vmatprep.subr.mxu0 0.0
    %301 = vmatpush1.msra.mxu0 0.0
    %302 = vmatprep.subr.mxu0 0.0
    %303 = vmatpush1.msra.mxu0 0.0
    %304 = vmatprep.subr.mxu0 0.0
    %305 = vmatpush1.msra.mxu0 %v112
    %306 = vmatprep.subr.mxu0 0.0
    %307 = vmatpush1.msra.mxu0 %v111
    %308 = vmatprep.subr.mxu0 0.0
    %309 = vmatpush1.msra.mxu0 %v110
    %310 = vmatprep.subr.mxu0 0.0
    %311 = vmatpush1.msra.mxu0 %v109
    %312 = vmatprep.subr.mxu0 0.0
    %313 = vmatpush2.msra.mxu0 0.0
    %314 = vmatprep.subr.mxu0 0.0
    %315 = vmatpush2.msra.mxu0 0.0
    %316 = vmatprep.subr.mxu0 0.0
    %317 = vmatpush2.msra.mxu0 0.0
    %318 = vmatprep.subr.mxu0 0.0
    %319 = vmatpush2.msra.mxu0 0.0
    %320 = vmatprep.subr.mxu0 0.0
    %321 = vmatpush2.msra.mxu0 0.0
    %322 = vmatprep.subr.mxu0 0.0
    %323 = vmatpush2.msra.mxu0 0.0
    %324 = vmatprep.subr.mxu0 0.0
    %325 = vmatpush2.msra.mxu0 0.0
    %326 = vmatprep.subr.mxu0 0.0
    %327 = vmatpush2.msra.mxu0 0.0
    %328 = vmatprep.subr.mxu0 0.0
    %329 = vmatpush2.msra.mxu0 0.0
    %330 = vmatprep.subr.mxu0 0.0
    %331 = vmatpush2.msra.mxu0 0.0
    %332 = vmatprep.subr.mxu0 0.0
    %333 = vmatpush2.msra.mxu0 0.0
    %334 = vmatprep.subr.mxu0 0.0
    %335 = vmatpush2.msra.mxu0 0.0
    %336 = vmatprep.subr.mxu0 0.0
    %337 = vmatpush2.msra.mxu0 0.0
    %338 = vmatprep.subr.mxu0 0.0
    %339 = vmatpush2.msra.mxu0 0.0
    %340 = vmatprep.subr.mxu0 0.0
    %341 = vmatpush2.msra.mxu0 0.0
    %342 = vmatprep.subr.mxu0 0.0
    %343 = vmatpush2.msra.mxu0 0.0
    %344 = vmatprep.mubr.f32.mxu0 0.0
    %345 = vmatmul.mubr.f32.gmra.mxu0 %v278
    %v346 = vpop.f32.mrf.mxu0
    %v347 = vadd.f32 %v125, %v346
    %v348 = vpop.f32.mrf.mxu0
    %349 = vdwg.mxu0
    %350 = vst.msk [vmem:[#allocation13] sm:$0xff] %vm129, %v276
    %351 = vst.msk [vmem:[#allocation12] sm:$0xff] %vm129, %v347
    %352 = vst.msk [vmem:[#allocation2] sm:$0xff] %vm129, %v276
    // Predicated region
    $region54: #{tpu_custom_call.1} parent=1 // pred_check
      _
    $region55: #{tpu_custom_call.1} parent=1 // pred_check_branch
      %354 = sbr.rel (0) target = $region57
    $region56: #{tpu_custom_call.1} parent=1 // pred_region
      %s356 = ssub.s32 128, 128
      %357 = vsyncadd [#allocation5], %s356
      %s359 = sshll.u32 [#allocation12], 4
      %s360 = int_to_ptr.vmem [resolvable:$true] %s359
      %362 = dma.vmem_to_hbm [thread:$0]  %s360, 128, %s7, [#allocation5]
    $region57: #{tpu_custom_call.1} parent=1 // pred_fallthru
      _
    // Predicated region
    $region58: #{tpu_custom_call.1} parent=1 // pred_check
      _
    $region59: #{tpu_custom_call.1} parent=1 // pred_check_branch
      %364 = sbr.rel (0) target = $region61
    $region60: #{tpu_custom_call.1} parent=1 // pred_region
      %s366 = ssub.s32 128, 128
      %367 = vsyncadd [#allocation14], %s366
      %s369 = sshll.u32 [#allocation13], 4
      %s370 = int_to_ptr.vmem [resolvable:$true] %s369
      %372 = dma.vmem_to_hbm [thread:$0]  %s370, 128, %s8, [#allocation14]
    $region61: #{tpu_custom_call.1} parent=1 // pred_fallthru
      _
    // Predicated region
    $region62: #{tpu_custom_call.1} parent=1 // pred_check
      _
    $region63: #{tpu_custom_call.1} parent=1 // pred_check_branch
      %374 = sbr.rel (0) target = $region65
    $region64: #{tpu_custom_call.1} parent=1 // pred_region
      %375 = dma.done [#allocation5], 128
    $region65: #{tpu_custom_call.1} parent=1 // pred_fallthru
      _
    // Predicated region
    $region66: #{tpu_custom_call.1} parent=1 // pred_check
      _
    $region67: #{tpu_custom_call.1} parent=1 // pred_check_branch
      %377 = sbr.rel (0) target = $region69
    $region68: #{tpu_custom_call.1} parent=1 // pred_region
      %378 = dma.done [#allocation14], 128
    $region69: #{tpu_custom_call.1} parent=1 // pred_fallthru
      _
    %379 = vsyncpa [#allocation4], 1
    %380 = vsyncpa [#allocation7], 1
    %381 = vsyncpa [#allocation10], 1
    %382 = vsyncpa [#allocation5], 1
    %383 = vsyncpa [#allocation14], 1

</llo_original>
